<compile_context>
chip_gen: v6e
topology: v6e:2x2x1
jax: 0.10.0
libtpu: 0.0.40
codegen_flags: <defaults>
</compile_context>

<pallas_src>
import functools

import jax
import jax.numpy as jnp
from jax.experimental import pallas as pl
from jax.experimental.pallas import tpu as pltpu

LANE = 128
HEAD_DIM = 3 + 4 + 3          # warp(3) | rotation(4) | scaling(3)
HEAD_PAD = LANE               # lane-dense fused head output width


def _round_up(x, m):
    return ((x + m - 1) // m) * m


# ----------------------------------------------------------------------------
# Kernel
# ----------------------------------------------------------------------------
def _deform_fine_kernel(depth,
                        mask_ref, x_ref,
                        wd4_ref, bd4_ref,
                        wg_ref, bg_ref,
                        wh_ref, bh_ref,
                        out_ref):
    # d4_mlp: Linear(d4_in, width) + ReLU.  bf16 operands -> MXU, f32 acc.
    h = jnp.dot(x_ref[...], wd4_ref[...], preferred_element_type=jnp.float32)
    h = jnp.maximum(h + bd4_ref[...], 0.0)

    # grid_mlp: depth x (Linear(width, width) + ReLU); depth is static.
    for d in range(depth):
        h = jnp.dot(h.astype(jnp.bfloat16), wg_ref[d],
                    preferred_element_type=jnp.float32)
        h = jnp.maximum(h + bg_ref[d], 0.0)

    # Fused heads: [warp | rot | scale | zero-pad] in one lane-dense matmul,
    # one wide output store, one (tm,1)->(tm,128) mask broadcast.
    head = jnp.dot(h.astype(jnp.bfloat16), wh_ref[...],
                   preferred_element_type=jnp.float32) + bh_ref[...]
    out_ref[...] = head * mask_ref[...]


# ----------------------------------------------------------------------------
# Param preparation (padding to (8,128)-aligned, bf16 weights, head fusion)
# ----------------------------------------------------------------------------
def _prepare_fine_params(params, depth):
    d4_in, width = params["w_d4"].shape
    d4_pad = _round_up(d4_in, LANE)
    w_pad = _round_up(width, LANE)

    def pad2(a, r, c):
        return jnp.pad(a, ((0, r - a.shape[0]), (0, c - a.shape[1])))

    w_d4 = pad2(params["w_d4"], d4_pad, w_pad).astype(jnp.bfloat16)
    b_d4 = pad2(params["b_d4"], 1, w_pad).astype(jnp.float32)

    w_grid = jnp.pad(params["w_grid"],
                     ((0, 0), (0, w_pad - width), (0, w_pad - width))
                     ).astype(jnp.bfloat16)
    b_grid = jnp.pad(params["b_grid"],
                     ((0, 0), (0, 0), (0, w_pad - width))).astype(jnp.float32)

    w_head = jnp.concatenate(
        [params["w_warp"], params["w_rot"], params["w_scale"]], axis=1)
    b_head = jnp.concatenate(
        [params["b_warp"], params["b_rot"], params["b_scale"]], axis=1)
    w_head = pad2(w_head, w_pad, HEAD_PAD).astype(jnp.bfloat16)
    b_head = pad2(b_head, 1, HEAD_PAD).astype(jnp.float32)

    return dict(w_d4=w_d4, b_d4=b_d4, w_grid=w_grid, b_grid=b_grid,
                w_head=w_head, b_head=b_head,
                d4_pad=d4_pad, w_pad=w_pad)


# ----------------------------------------------------------------------------
# Wrapper
# ----------------------------------------------------------------------------
def deform_fine_pallas(params, mask, d4_h, *, depth, tm=512):
    """'fine' stage hot path in one Pallas kernel, row-tiled over gaussians."""
    n, d4_in = d4_h.shape
    prep = _prepare_fine_params(params, depth)
    d4_pad, w_pad = prep["d4_pad"], prep["w_pad"]

    # Row tile: shrink for small N, keep a sublane multiple, pad N up to it.
    tm_eff = min(tm, _round_up(n, 8))
    n_pad = pl.cdiv(n, tm_eff) * tm_eff
    grid = (n_pad // tm_eff,)

    mask_f32 = jnp.pad(mask.astype(jnp.float32), (0, n_pad - n))[:, None]
    x = jnp.pad(d4_h, ((0, n_pad - n), (0, d4_pad - d4_in))
                ).astype(jnp.bfloat16)

    def row_spec(c):
        return pl.BlockSpec((tm_eff, c), lambda i: (i, 0))

    def full_spec(shape):
        nd = len(shape)
        return pl.BlockSpec(shape, lambda i, _nd=nd: (0,) * _nd)

    kernel = functools.partial(_deform_fine_kernel, depth)

    out = pl.pallas_call(
        kernel,
        out_shape=jax.ShapeDtypeStruct((n_pad, HEAD_PAD), jnp.float32),
        grid_spec=pltpu.PrefetchScalarGridSpec(
            num_scalar_prefetch=0,
            grid=grid,
            in_specs=[
                row_spec(1),                          # mask      (n_pad, 1)
                row_spec(d4_pad),                     # d4_h      (n_pad, d4_pad)
                full_spec((d4_pad, w_pad)),           # w_d4
                full_spec((1, w_pad)),                # b_d4
                full_spec((depth, w_pad, w_pad)),     # w_grid (stacked)
                full_spec((depth, 1, w_pad)),         # b_grid (stacked)
                full_spec((w_pad, HEAD_PAD)),         # fused head weight
                full_spec((1, HEAD_PAD)),             # fused head bias
            ],
            out_specs=row_spec(HEAD_PAD),
        ),
        compiler_params=pltpu.CompilerParams(
            dimension_semantics=("parallel",)),
    )(
        mask_f32, x,
        prep["w_d4"], prep["b_d4"],
        prep["w_grid"], prep["b_grid"],
        prep["w_head"], prep["b_head"],
    )

    out = out[:n]
    d_xyz = out[:, 0:3]
    d_rotation = out[:, 3:7]
    d_scaling = out[:, 7:HEAD_DIM]
    return d_xyz, d_rotation, d_scaling


def deform_forward(params, mask, t, spatial_dxyz, d4_h, stage="fine", *, depth):
    """Mirrors DeformNetwork.forward: returns
    (d_xyz, d_rotation, d_scaling, d_opacity, d_shs.view(-1, 16, 3))."""
    n = mask.shape[0]
    d_xyz = jnp.zeros((n, 3), jnp.float32)
    d_scaling = jnp.zeros((n, 3), jnp.float32)
    d_rotation = jnp.zeros((n, 4), jnp.float32)
    d_opacity = jnp.zeros((n, 1), jnp.float32)
    d_shs = jnp.zeros((n, 3 * 16), jnp.float32)

    if stage == "coarse":
        d_xyz = spatial_dxyz * t                     # plain-JAX glue
    if stage == "fine":
        d_xyz, d_rotation, d_scaling = deform_fine_pallas(
            params, mask, d4_h, depth=depth)

    return d_xyz, d_rotation, d_scaling, d_opacity, d_shs.reshape(-1, 16, 3)


# ----------------------------------------------------------------------------
# Synthetic init + reference
# ----------------------------------------------------------------------------
def init_params(key, d4_in_dim, width, depth):
    """Deterministic synthetic init (PyTorch-Linear style uniform)."""
    def linear(k, fan_in, fan_out):
        kw, kb = jax.random.split(k)
        bound = 1.0 / jnp.sqrt(fan_in)
        w = jax.random.uniform(kw, (fan_in, fan_out), jnp.float32, -bound, bound)
        b = jax.random.uniform(kb, (1, fan_out), jnp.float32, -bound, bound)
        return w, b

    keys = jax.random.split(key, 5 + depth)
    w_d4, b_d4 = linear(keys[0], d4_in_dim, width)
    wg, bg = [], []
    for d in range(depth):
        w, b = linear(keys[1 + d], width, width)
        wg.append(w)
        bg.append(b)
    w_warp, b_warp = linear(keys[1 + depth], width, 3)
    w_rot, b_rot = linear(keys[2 + depth], width, 4)
    w_scale, b_scale = linear(keys[3 + depth], width, 3)
    # gaussian_opacity / gaussian_shs / spatial_warp / d3_mlp exist in
    # __init__ but are unused by forward(); intentionally omitted.
    return {
        "w_d4": w_d4, "b_d4": b_d4,
        "w_grid": jnp.stack(wg), "b_grid": jnp.stack(bg),
        "w_warp": w_warp, "b_warp": b_warp,
        "w_rot": w_rot, "b_rot": b_rot,
        "w_scale": w_scale, "b_scale": b_scale,
    }


def _reference_fine(params, mask, d4_h, depth):
    h = jnp.maximum(d4_h @ params["w_d4"] + params["b_d4"], 0.0)
    for d in range(depth):
        h = jnp.maximum(h @ params["w_grid"][d] + params["b_grid"][d], 0.0)
    m = mask.astype(jnp.float32)[:, None]
    d_xyz = (h @ params["w_warp"] + params["b_warp"]) * m
    d_rot = (h @ params["w_rot"] + params["b_rot"]) * m
    d_sca = (h @ params["w_scale"] + params["b_scale"]) * m
    return d_xyz, d_rot, d_sca


if __name__ == "__main__":
    # Small shapes consistent with the module (module default width=256;
    # kept small here — the wrapper pads feature dims to 128 internally).
    N = 128          # number of gaussians
    D4_IN = 32       # d4_in_dim
    WIDTH = 32       # network width
    DEPTH = 1

    key = jax.random.PRNGKey(0)
    k_params, k_mask, k_x, k_sp = jax.random.split(key, 4)

    params = init_params(k_params, D4_IN, WIDTH, DEPTH)
    mask = jax.random.bernoulli(k_mask, 0.6, (N,))
    d4_h = jax.random.normal(k_x, (N, D4_IN), jnp.float32)
    spatial_dxyz = jax.random.normal(k_sp, (N, 3), jnp.float32)
    t = jnp.float32(0.5)

    outs = deform_forward(params, mask, t, spatial_dxyz, d4_h,
                          stage="fine", depth=DEPTH)
    outs = jax.block_until_ready(outs)
    d_xyz, d_rotation, d_scaling, d_opacity, d_shs = outs

    # sanity vs. plain-JAX f32 reference (bf16 dots stay within tolerance)
    ref_xyz, ref_rot, ref_sca = _reference_fine(params, mask, d4_h, DEPTH)
    assert d_xyz.shape == (N, 3) and d_rotation.shape == (N, 4)
    assert d_scaling.shape == (N, 3) and d_opacity.shape == (N, 1)
    assert d_shs.shape == (N, 16, 3)
    assert jnp.allclose(d_xyz, ref_xyz, atol=2e-2, rtol=2e-2)
    assert jnp.allclose(d_rotation, ref_rot, atol=2e-2, rtol=2e-2)
    assert jnp.allclose(d_scaling, ref_sca, atol=2e-2, rtol=2e-2)
    # masked-out rows must be exactly zero (matches the zeros-initialized
    # tensors in the PyTorch forward)
    mz = ~mask
    assert jnp.all(d_xyz[mz] == 0) and jnp.all(d_rotation[mz] == 0)

    # coarse path (plain-JAX glue) also exercised once
    c_out = jax.block_until_ready(
        deform_forward(params, mask, t, spatial_dxyz, d4_h,
                       stage="coarse", depth=DEPTH))
    assert jnp.allclose(c_out[0], spatial_dxyz * t)

    print("KERNEL_OK")
</pallas_src>

<mosaic_0001>
module attributes {stable_mosaic.version = 11 : i64} {
  func.func @_deform_fine_kernel(%arg0: i32, %arg1: memref<128x1xf32, #tpu.memory_space<vmem>>, %arg2: memref<128x128xbf16, #tpu.memory_space<vmem>>, %arg3: memref<128x128xbf16, #tpu.memory_space<vmem>>, %arg4: memref<1x128xf32, #tpu.memory_space<vmem>>, %arg5: memref<1x128x128xbf16, #tpu.memory_space<vmem>>, %arg6: memref<1x1x128xf32, #tpu.memory_space<vmem>>, %arg7: memref<128x128xbf16, #tpu.memory_space<vmem>>, %arg8: memref<1x128xf32, #tpu.memory_space<vmem>>, %arg9: memref<128x128xf32, #tpu.memory_space<vmem>>) attributes {dimension_semantics = [#tpu.dimension_semantics<parallel>], iteration_bounds = array<i64: 1>, scalar_prefetch = 0 : i64, scratch_operands = 0 : i64, tpu.core_type = #tpu.core_type<tc>, window_params = [{transform_indices = @transform_0, window_bounds = array<i64: 128, 1>}, {transform_indices = @transform_1, window_bounds = array<i64: 128, 128>}, {pipeline_mode = #tpu.pipeline_mode<synchronous>, transform_indices = @transform_2, window_bounds = array<i64: 128, 128>}, {pipeline_mode = #tpu.pipeline_mode<synchronous>, transform_indices = @transform_3, window_bounds = array<i64: 1, 128>}, {pipeline_mode = #tpu.pipeline_mode<synchronous>, transform_indices = @transform_4, window_bounds = array<i64: 1, 128, 128>}, {pipeline_mode = #tpu.pipeline_mode<synchronous>, transform_indices = @transform_5, window_bounds = array<i64: 1, 1, 128>}, {pipeline_mode = #tpu.pipeline_mode<synchronous>, transform_indices = @transform_6, window_bounds = array<i64: 128, 128>}, {pipeline_mode = #tpu.pipeline_mode<synchronous>, transform_indices = @transform_7, window_bounds = array<i64: 1, 128>}, {transform_indices = @transform_8, window_bounds = array<i64: 128, 128>}]} {
    %c0 = arith.constant 0 : index
    %c0_0 = arith.constant 0 : index
    %0 = vector.load %arg2[%c0, %c0_0] : memref<128x128xbf16, #tpu.memory_space<vmem>>, vector<128x128xbf16>
    %c0_1 = arith.constant 0 : index
    %c0_2 = arith.constant 0 : index
    %1 = vector.load %arg3[%c0_1, %c0_2] : memref<128x128xbf16, #tpu.memory_space<vmem>>, vector<128x128xbf16>
    %cst = arith.constant dense<0.000000e+00> : vector<128x128xf32>
    %2 = tpu.matmul %0, %1, %cst {dimension_numbers = #tpu.dot_dimension_numbers<[1], [0], [0], [1], [0, 0, 1, 1], [], []>} : vector<128x128xbf16>, vector<128x128xbf16>, vector<128x128xf32> -> vector<128x128xf32>
    %c0_3 = arith.constant 0 : index
    %c0_4 = arith.constant 0 : index
    %3 = vector.load %arg4[%c0_3, %c0_4] : memref<1x128xf32, #tpu.memory_space<vmem>>, vector<1x128xf32>
    %4 = vector.broadcast %3 : vector<1x128xf32> to vector<128x128xf32>
    %5 = arith.addf %2, %4 : vector<128x128xf32>
    %cst_5 = arith.constant 0.000000e+00 : f32
    %6 = vector.broadcast %cst_5 : f32 to vector<128x128xf32>
    %7 = arith.maximumf %5, %6 : vector<128x128xf32>
    %8 = arith.truncf %7 : vector<128x128xf32> to vector<128x128xbf16>
    %c0_6 = arith.constant 0 : index
    %c0_7 = arith.constant 0 : index
    %c0_8 = arith.constant 0 : index
    %9 = vector.load %arg5[%c0_6, %c0_7, %c0_8] : memref<1x128x128xbf16, #tpu.memory_space<vmem>>, vector<1x128x128xbf16>
    %10 = vector.shape_cast %9 : vector<1x128x128xbf16> to vector<128x128xbf16>
    %cst_9 = arith.constant dense<0.000000e+00> : vector<128x128xf32>
    %11 = tpu.matmul %8, %10, %cst_9 {dimension_numbers = #tpu.dot_dimension_numbers<[1], [0], [0], [1], [0, 0, 1, 1], [], []>} : vector<128x128xbf16>, vector<128x128xbf16>, vector<128x128xf32> -> vector<128x128xf32>
    %c0_10 = arith.constant 0 : index
    %c0_11 = arith.constant 0 : index
    %c0_12 = arith.constant 0 : index
    %12 = vector.load %arg6[%c0_10, %c0_11, %c0_12] : memref<1x1x128xf32, #tpu.memory_space<vmem>>, vector<1x1x128xf32>
    %13 = vector.shape_cast %12 : vector<1x1x128xf32> to vector<1x128xf32>
    %14 = vector.broadcast %13 : vector<1x128xf32> to vector<128x128xf32>
    %15 = arith.addf %11, %14 : vector<128x128xf32>
    %cst_13 = arith.constant 0.000000e+00 : f32
    %16 = vector.broadcast %cst_13 : f32 to vector<128x128xf32>
    %17 = arith.maximumf %15, %16 : vector<128x128xf32>
    %18 = arith.truncf %17 : vector<128x128xf32> to vector<128x128xbf16>
    %c0_14 = arith.constant 0 : index
    %c0_15 = arith.constant 0 : index
    %19 = vector.load %arg7[%c0_14, %c0_15] : memref<128x128xbf16, #tpu.memory_space<vmem>>, vector<128x128xbf16>
    %cst_16 = arith.constant dense<0.000000e+00> : vector<128x128xf32>
    %20 = tpu.matmul %18, %19, %cst_16 {dimension_numbers = #tpu.dot_dimension_numbers<[1], [0], [0], [1], [0, 0, 1, 1], [], []>} : vector<128x128xbf16>, vector<128x128xbf16>, vector<128x128xf32> -> vector<128x128xf32>
    %c0_17 = arith.constant 0 : index
    %c0_18 = arith.constant 0 : index
    %21 = vector.load %arg8[%c0_17, %c0_18] : memref<1x128xf32, #tpu.memory_space<vmem>>, vector<1x128xf32>
    %22 = vector.broadcast %21 : vector<1x128xf32> to vector<128x128xf32>
    %23 = arith.addf %20, %22 : vector<128x128xf32>
    %c0_19 = arith.constant 0 : index
    %c0_20 = arith.constant 0 : index
    %24 = vector.load %arg1[%c0_19, %c0_20] : memref<128x1xf32, #tpu.memory_space<vmem>>, vector<128x1xf32>
    %25 = vector.broadcast %24 : vector<128x1xf32> to vector<128x128xf32>
    %26 = arith.mulf %23, %25 : vector<128x128xf32>
    %c0_21 = arith.constant 0 : index
    %c0_22 = arith.constant 0 : index
    %27 = vector.load %arg9[%c0_21, %c0_22] : memref<128x128xf32, #tpu.memory_space<vmem>>, vector<128x128xf32>
    tpu.vector_store %arg9[%c0_21, %c0_22], %26 {strides = array<i32>} : memref<128x128xf32, #tpu.memory_space<vmem>>, vector<128x128xf32>,
    return
  }
  func.func @transform_0(%arg0: i32) -> (i32, i32) {
    %c0_i32 = arith.constant 0 : i32
    %c0_i32_0 = arith.constant 0 : i32
    return %arg0, %c0_i32 : i32, i32
  }
  func.func @transform_1(%arg0: i32) -> (i32, i32) {
    %c0_i32 = arith.constant 0 : i32
    %c0_i32_0 = arith.constant 0 : i32
    return %arg0, %c0_i32 : i32, i32
  }
  func.func @transform_2(%arg0: i32) -> (i32, i32) {
    %c0_i32 = arith.constant 0 : i32
    %c0_i32_0 = arith.constant 0 : i32
    %c0_i32_1 = arith.constant 0 : i32
    return %c0_i32, %c0_i32_0 : i32, i32
  }
  func.func @transform_3(%arg0: i32) -> (i32, i32) {
    %c0_i32 = arith.constant 0 : i32
    %c0_i32_0 = arith.constant 0 : i32
    %c0_i32_1 = arith.constant 0 : i32
    return %c0_i32, %c0_i32_0 : i32, i32
  }
  func.func @transform_4(%arg0: i32) -> (i32, i32, i32) {
    %c0_i32 = arith.constant 0 : i32
    %c0_i32_0 = arith.constant 0 : i32
    %c0_i32_1 = arith.constant 0 : i32
    %c0_i32_2 = arith.constant 0 : i32
    return %c0_i32, %c0_i32_0, %c0_i32_1 : i32, i32, i32
  }
  func.func @transform_5(%arg0: i32) -> (i32, i32, i32) {
    %c0_i32 = arith.constant 0 : i32
    %c0_i32_0 = arith.constant 0 : i32
    %c0_i32_1 = arith.constant 0 : i32
    %c0_i32_2 = arith.constant 0 : i32
    return %c0_i32, %c0_i32_0, %c0_i32_1 : i32, i32, i32
  }
  func.func @transform_6(%arg0: i32) -> (i32, i32) {
    %c0_i32 = arith.constant 0 : i32
    %c0_i32_0 = arith.constant 0 : i32
    %c0_i32_1 = arith.constant 0 : i32
    return %c0_i32, %c0_i32_0 : i32, i32
  }
  func.func @transform_7(%arg0: i32) -> (i32, i32) {
    %c0_i32 = arith.constant 0 : i32
    %c0_i32_0 = arith.constant 0 : i32
    %c0_i32_1 = arith.constant 0 : i32
    return %c0_i32, %c0_i32_0 : i32, i32
  }
  func.func @transform_8(%arg0: i32) -> (i32, i32) {
    %c0_i32 = arith.constant 0 : i32
    %c0_i32_0 = arith.constant 0 : i32
    return %arg0, %c0_i32 : i32, i32
  }
}

</mosaic_0001>

<llo_original>
// kernel: tpu_custom_call.1
$region0: #{tpu_custom_call.1}
  #allocation0 [shape = 'u32[]', space=smem, size = 0x4, offset = 0x4, fixed_abs, tag = 'smem constant byte address 0x4 - core index']
  #allocation1 [shape = 'u32[144,128]{1,0:T(1,128)}', space=vmem, size = 0x12000, scoped, tag = 'internal scratch']
  %s0 = inlined_call_operand.vmem [shape: f32[128,1], index: 0, kind: input, shape index: {}]
  %s1 = inlined_call_operand.vmem [shape: bf16[128,128], index: 1, kind: input, shape index: {}]
  %s2 = inlined_call_operand.vmem [shape: bf16[128,128], index: 2, kind: input, shape index: {}]
  %s3 = inlined_call_operand.vmem [shape: f32[1,128], index: 3, kind: input, shape index: {}]
  %s4 = inlined_call_operand.hbm [shape: bf16[1,128,128], index: 4, kind: input, shape index: {}]
  %s5 = inlined_call_operand.vmem [shape: f32[1,1,128], index: 5, kind: input, shape index: {}]
  %s6 = inlined_call_operand.hbm [shape: bf16[128,128], index: 6, kind: input, shape index: {}]
  %s7 = inlined_call_operand.vmem [shape: f32[1,128], index: 7, kind: input, shape index: {}]
  %s8 = inlined_call_operand.hbm [shape: f32[128,128], index: 8, kind: output, shape index: {}]
  %s9 = sld [smem:[#allocation0]]
  $region50: #{tpu_custom_call.1} parent=0
    _
  %s11 = ssub.s32 1, %s9
  %s12 = scalar_select 0, %s11, %s9
  $region1: #{tpu_custom_call.1} parent=0
    #allocation2 [shape = 'u8[32768]{0}', space=vmem, size = 0x8000, scoped, tag = 'input window, operand 4, single buffered']
    #allocation3 [shape = 's32[1]{0}', space=sflag, size = 0x4, scoped, tag = 'scoped memory for tpu_custom_call.1']
    #allocation4 [shape = 's32[1]{0}', space=sflag, size = 0x4, scoped, tag = 'scoped memory for tpu_custom_call.1']
    #allocation5 [shape = 'u8[32768]{0}', space=vmem, size = 0x8000, scoped, tag = 'input window, operand 6, single buffered']
    #allocation6 [shape = 's32[1]{0}', space=sflag, size = 0x4, scoped, tag = 'scoped memory for tpu_custom_call.1']
    #allocation7 [shape = 'u8[65536]{0}', space=vmem, size = 0x10000, scoped, tag = 'output window, operand 0, single buffered']
    %13 = vsyncpa [#allocation3], 0
    %14 = vsyncpa [#allocation6], 0
    %15 = vsyncpa [#allocation4], 0
    // Predicated region
    $region2: #{tpu_custom_call.1} parent=1 // pred_check
      _
    $region3: #{tpu_custom_call.1} parent=1 // pred_check_branch
      %17 = sbr.rel (0) target = $region5
    $region4: #{tpu_custom_call.1} parent=1 // pred_region
      _
    $region5: #{tpu_custom_call.1} parent=1 // pred_fallthru
      _
    // Predicated region
    $region6: #{tpu_custom_call.1} parent=1 // pred_check
      _
    $region7: #{tpu_custom_call.1} parent=1 // pred_check_branch
      %19 = sbr.rel (0) target = $region9
    $region8: #{tpu_custom_call.1} parent=1 // pred_region
      _
    $region9: #{tpu_custom_call.1} parent=1 // pred_fallthru
      _
    // Predicated region
    $region10: #{tpu_custom_call.1} parent=1 // pred_check
      _
    $region11: #{tpu_custom_call.1} parent=1 // pred_check_branch
      %21 = sbr.rel (0) target = $region13
    $region12: #{tpu_custom_call.1} parent=1 // pred_region
      _
    $region13: #{tpu_custom_call.1} parent=1 // pred_fallthru
      _
    // Predicated region
    $region14: #{tpu_custom_call.1} parent=1 // pred_check
      _
    $region15: #{tpu_custom_call.1} parent=1 // pred_check_branch
      %23 = sbr.rel (0) target = $region17
    $region16: #{tpu_custom_call.1} parent=1 // pred_region
      _
    $region17: #{tpu_custom_call.1} parent=1 // pred_fallthru
      _
    // Predicated region
    $region18: #{tpu_custom_call.1} parent=1 // pred_check
      _
    $region19: #{tpu_custom_call.1} parent=1 // pred_check_branch
      %25 = sbr.rel (0) target = $region21
    $region20: #{tpu_custom_call.1} parent=1 // pred_region
      %s27 = ssub.s32 1024, 1024
      %28 = vsyncadd [#allocation3], %s27
      %s29 = sshll.u32 [#allocation2], 4
      %s30 = int_to_ptr.vmem [resolvable:$true] %s29
      %35 = dma.hbm_to_vmem [thread:$0]  %s4, 1024, %s30, [#allocation3], 64, 64, 4
    $region21: #{tpu_custom_call.1} parent=1 // pred_fallthru
      _
    // Predicated region
    $region22: #{tpu_custom_call.1} parent=1 // pred_check
      _
    $region23: #{tpu_custom_call.1} parent=1 // pred_check_branch
      %37 = sbr.rel (0) target = $region25
    $region24: #{tpu_custom_call.1} parent=1 // pred_region
      _
    $region25: #{tpu_custom_call.1} parent=1 // pred_fallthru
      _
    // Predicated region
    $region26: #{tpu_custom_call.1} parent=1 // pred_check
      _
    $region27: #{tpu_custom_call.1} parent=1 // pred_check_branch
      %39 = sbr.rel (0) target = $region29
    $region28: #{tpu_custom_call.1} parent=1 // pred_region
      %s41 = ssub.s32 1024, 1024
      %42 = vsyncadd [#allocation6], %s41
      %s43 = sshll.u32 [#allocation5], 4
      %s44 = int_to_ptr.vmem [resolvable:$true] %s43
      %49 = dma.hbm_to_vmem [thread:$0]  %s6, 1024, %s44, [#allocation6], 64, 64, 4
    $region29: #{tpu_custom_call.1} parent=1 // pred_fallthru
      _
    // Predicated region
    $region30: #{tpu_custom_call.1} parent=1 // pred_check
      _
    $region31: #{tpu_custom_call.1} parent=1 // pred_check_branch
      %51 = sbr.rel (0) target = $region33
    $region32: #{tpu_custom_call.1} parent=1 // pred_region
      _
    $region33: #{tpu_custom_call.1} parent=1 // pred_fallthru
      _
    // Predicated region
    $region34: #{tpu_custom_call.1} parent=1 // pred_check
      _
    $region35: #{tpu_custom_call.1} parent=1 // pred_check_branch
      %53 = sbr.rel (0) target = $region37
    $region36: #{tpu_custom_call.1} parent=1 // pred_region
      %54 = dma.done [#allocation3], 1024
    $region37: #{tpu_custom_call.1} parent=1 // pred_fallthru
      _
    // Predicated region
    $region38: #{tpu_custom_call.1} parent=1 // pred_check
      _
    $region39: #{tpu_custom_call.1} parent=1 // pred_check_branch
      %56 = sbr.rel (0) target = $region41
    $region40: #{tpu_custom_call.1} parent=1 // pred_region
      %57 = dma.done [#allocation6], 1024
    $region41: #{tpu_custom_call.1} parent=1 // pred_fallthru
      _
    %v59 = vld [vmem:[%s1] sm:$0xf]
    %v60 = vld [vmem:[%s1 + $0x4] sm:$0xf]
    %v61 = vld [vmem:[%s1 + $0x8] sm:$0xf]
    %v62 = vld [vmem:[%s1 + $0xc] sm:$0xf]
    %v63 = vld [vmem:[%s1 + $0x10] sm:$0xf]
    %v64 = vld [vmem:[%s1 + $0x14] sm:$0xf]
    %v65 = vld [vmem:[%s1 + $0x18] sm:$0xf]
    %v66 = vld [vmem:[%s1 + $0x1c] sm:$0xf]
    %v67 = vld [vmem:[%s1 + $0x20] sm:$0xf]
    %v68 = vld [vmem:[%s1 + $0x24] sm:$0xf]
    %v69 = vld [vmem:[%s1 + $0x28] sm:$0xf]
    %v70 = vld [vmem:[%s1 + $0x2c] sm:$0xf]
    %v71 = vld [vmem:[%s1 + $0x30] sm:$0xf]
    %v72 = vld [vmem:[%s1 + $0x34] sm:$0xf]
    %v73 = vld [vmem:[%s1 + $0x38] sm:$0xf]
    %v74 = vld [vmem:[%s1 + $0x3c] sm:$0xf]
    %v75 = vld [vmem:[%s2] sm:$0xf]
    %v76 = vld [vmem:[%s2 + $0x4] sm:$0xf]
    %v77 = vld [vmem:[%s2 + $0x8] sm:$0xf]
    %v78 = vld [vmem:[%s2 + $0xc] sm:$0xf]
    %v79 = vld [vmem:[%s2 + $0x10] sm:$0xf]
    %v80 = vld [vmem:[%s2 + $0x14] sm:$0xf]
    %v81 = vld [vmem:[%s2 + $0x18] sm:$0xf]
    %v82 = vld [vmem:[%s2 + $0x1c] sm:$0xf]
    %v83 = vld [vmem:[%s2 + $0x20] sm:$0xf]
    %v84 = vld [vmem:[%s2 + $0x24] sm:$0xf]
    %v85 = vld [vmem:[%s2 + $0x28] sm:$0xf]
    %v86 = vld [vmem:[%s2 + $0x2c] sm:$0xf]
    %v87 = vld [vmem:[%s2 + $0x30] sm:$0xf]
    %v88 = vld [vmem:[%s2 + $0x34] sm:$0xf]
    %v89 = vld [vmem:[%s2 + $0x38] sm:$0xf]
    %v90 = vld [vmem:[%s2 + $0x3c] sm:$0xf]
    %v91 = vld [vmem:[%s3] sm:$0x1]
    %v93 = vlaneseq
    %v94 = vshrl.u32 %v93, 7
    %v95 = vsub.s32 0, %v94
    %v96 = vrot.slane %v91, %v95
    %v114 = vunpack.c.l.b16 %v59
    %v115 = vunpack.c.l.b16 %v60
    %v116 = vunpack.c.l.b16 %v61
    %v117 = vunpack.c.l.b16 %v62
    %v118 = vunpack.c.l.b16 %v63
    %v119 = vunpack.c.l.b16 %v64
    %v120 = vunpack.c.l.b16 %v65
    %v121 = vunpack.c.l.b16 %v66
    %v122 = vunpack.c.l.b16 %v67
    %v123 = vunpack.c.l.b16 %v68
    %v124 = vunpack.c.l.b16 %v69
    %v125 = vunpack.c.l.b16 %v70
    %v126 = vunpack.c.l.b16 %v71
    %v127 = vunpack.c.l.b16 %v72
    %v128 = vunpack.c.l.b16 %v73
    %v129 = vunpack.c.l.b16 %v74
    %v130 = vpack.c.b16 %v115, %v114
    %v131 = vpack.c.b16 %v117, %v116
    %v132 = vpack.c.b16 %v119, %v118
    %v133 = vpack.c.b16 %v121, %v120
    %v134 = vpack.c.b16 %v123, %v122
    %v135 = vpack.c.b16 %v125, %v124
    %v136 = vpack.c.b16 %v127, %v126
    %v137 = vpack.c.b16 %v129, %v128
    %v162 = vunpack.c.l.b16 %v75
    %v163 = vunpack.c.l.b16 %v76
    %v164 = vunpack.c.l.b16 %v77
    %v165 = vunpack.c.l.b16 %v78
    %v166 = vunpack.c.l.b16 %v79
    %v167 = vunpack.c.l.b16 %v80
    %v168 = vunpack.c.l.b16 %v81
    %v169 = vunpack.c.l.b16 %v82
    %v170 = vunpack.c.l.b16 %v83
    %v171 = vunpack.c.l.b16 %v84
    %v172 = vunpack.c.l.b16 %v85
    %v173 = vunpack.c.l.b16 %v86
    %v174 = vunpack.c.l.b16 %v87
    %v175 = vunpack.c.l.b16 %v88
    %v176 = vunpack.c.l.b16 %v89
    %v177 = vunpack.c.l.b16 %v90
    %v178 = vpack.c.b16 %v163, %v162
    %v179 = vpack.c.b16 %v165, %v164
    %v180 = vpack.c.b16 %v167, %v166
    %v181 = vpack.c.b16 %v169, %v168
    %v182 = vpack.c.b16 %v171, %v170
    %v183 = vpack.c.b16 %v173, %v172
    %v184 = vpack.c.b16 %v175, %v174
    %v185 = vpack.c.b16 %v177, %v176
    %194 = vmatprep.subr.bf16.mxu0 0
    %195 = vmatpush1.bf16.msra.mxu0 %v185
    %196 = vmatprep.subr.bf16.mxu0 0
    %197 = vmatpush1.bf16.msra.mxu0 %v184
    %198 = vmatprep.subr.bf16.mxu0 0
    %199 = vmatpush1.bf16.msra.mxu0 %v183
    %200 = vmatprep.subr.bf16.mxu0 0
    %201 = vmatpush1.bf16.msra.mxu0 %v182
    %202 = vmatprep.subr.bf16.mxu0 0
    %203 = vmatpush1.bf16.msra.mxu0 %v181
    %204 = vmatprep.subr.bf16.mxu0 0
    %205 = vmatpush1.bf16.msra.mxu0 %v180
    %206 = vmatprep.subr.bf16.mxu0 0
    %207 = vmatpush1.bf16.msra.mxu0 %v179
    %208 = vmatprep.subr.bf16.mxu0 0
    %209 = vmatpush1.bf16.msra.mxu0 %v178
    %210 = vmatprep.subr.bf16.mxu0 0
    %211 = vmatpush2.bf16.msra.mxu0 0
    %212 = vmatprep.subr.bf16.mxu0 0
    %213 = vmatpush2.bf16.msra.mxu0 0
    %214 = vmatprep.subr.bf16.mxu0 0
    %215 = vmatpush2.bf16.msra.mxu0 0
    %216 = vmatprep.subr.bf16.mxu0 0
    %217 = vmatpush2.bf16.msra.mxu0 0
    %218 = vmatprep.subr.bf16.mxu0 0
    %219 = vmatpush2.bf16.msra.mxu0 0
    %220 = vmatprep.subr.bf16.mxu0 0
    %221 = vmatpush2.bf16.msra.mxu0 0
    %222 = vmatprep.subr.bf16.mxu0 0
    %223 = vmatpush2.bf16.msra.mxu0 0
    %224 = vmatprep.subr.bf16.mxu0 0
    %225 = vmatpush2.bf16.msra.mxu0 0
    %226 = vmatprep.mubr.bf16.mxu0 0
    %227 = vmatmul.mubr.bf16.gmra.mxu0 %v130
    %v228 = vpop.f32.mrf.mxu0
    %v229 = vadd.f32 %v96, %v228
    %v230 = vpop.f32.mrf.mxu0
    %v231 = vpop.f32.mrf.mxu0
    %v232 = vadd.f32 %v96, %v231
    %v233 = vpop.f32.mrf.mxu0
    %234 = vmatprep.mubr.bf16.mxu0 0
    %235 = vmatmul.mubr.bf16.gmra.mxu0 %v131
    %v236 = vpop.f32.mrf.mxu0
    %v237 = vadd.f32 %v96, %v236
    %v238 = vpop.f32.mrf.mxu0
    %v239 = vpop.f32.mrf.mxu0
    %v240 = vadd.f32 %v96, %v239
    %v241 = vpop.f32.mrf.mxu0
    %242 = vmatprep.mubr.bf16.mxu0 0
    %243 = vmatmul.mubr.bf16.gmra.mxu0 %v132
    %v244 = vpop.f32.mrf.mxu0
    %v245 = vadd.f32 %v96, %v244
    %v246 = vpop.f32.mrf.mxu0
    %v247 = vpop.f32.mrf.mxu0
    %v248 = vadd.f32 %v96, %v247
    %v249 = vpop.f32.mrf.mxu0
    %250 = vmatprep.mubr.bf16.mxu0 0
    %251 = vmatmul.mubr.bf16.gmra.mxu0 %v133
    %v252 = vpop.f32.mrf.mxu0
    %v253 = vadd.f32 %v96, %v252
    %v254 = vpop.f32.mrf.mxu0
    %v255 = vpop.f32.mrf.mxu0
    %v256 = vadd.f32 %v96, %v255
    %v257 = vpop.f32.mrf.mxu0
    %258 = vmatprep.mubr.bf16.mxu0 0
    %259 = vmatmul.mubr.bf16.gmra.mxu0 %v134
    %v260 = vpop.f32.mrf.mxu0
    %v261 = vadd.f32 %v96, %v260
    %v262 = vpop.f32.mrf.mxu0
    %v263 = vpop.f32.mrf.mxu0
    %v264 = vadd.f32 %v96, %v263
    %v265 = vpop.f32.mrf.mxu0
    %266 = vmatprep.mubr.bf16.mxu0 0
    %267 = vmatmul.mubr.bf16.gmra.mxu0 %v135
    %v268 = vpop.f32.mrf.mxu0
    %v269 = vadd.f32 %v96, %v268
    %v270 = vpop.f32.mrf.mxu0
    %v271 = vpop.f32.mrf.mxu0
    %v272 = vadd.f32 %v96, %v271
    %v273 = vpop.f32.mrf.mxu0
    %274 = vmatprep.mubr.bf16.mxu0 0
    %275 = vmatmul.mubr.bf16.gmra.mxu0 %v136
    %v276 = vpop.f32.mrf.mxu0
    %v277 = vadd.f32 %v96, %v276
    %v278 = vpop.f32.mrf.mxu0
    %v279 = vpop.f32.mrf.mxu0
    %v280 = vadd.f32 %v96, %v279
    %v281 = vpop.f32.mrf.mxu0
    %282 = vmatprep.mubr.bf16.mxu0 0
    %283 = vmatmul.mubr.bf16.gmra.mxu0 %v137
    %v284 = vpop.f32.mrf.mxu0
    %v285 = vadd.f32 %v96, %v284
    %v286 = vpop.f32.mrf.mxu0
    %v287 = vpop.f32.mrf.mxu0
    %v288 = vadd.f32 %v96, %v287
    %v289 = vpop.f32.mrf.mxu0
    %290 = vdwg.mxu0
    %v291 = vmax.f32 %v229, 0.0
    %v292 = vmax.f32 %v232, 0.0
    %v293 = vmax.f32 %v237, 0.0
    %v294 = vmax.f32 %v240, 0.0
    %v295 = vmax.f32 %v245, 0.0
    %v296 = vmax.f32 %v248, 0.0
    %v297 = vmax.f32 %v253, 0.0
    %v298 = vmax.f32 %v256, 0.0
    %v299 = vmax.f32 %v261, 0.0
    %v300 = vmax.f32 %v264, 0.0
    %v301 = vmax.f32 %v269, 0.0
    %v302 = vmax.f32 %v272, 0.0
    %v303 = vmax.f32 %v277, 0.0
    %v304 = vmax.f32 %v280, 0.0
    %v305 = vmax.f32 %v285, 0.0
    %v306 = vmax.f32 %v288, 0.0
    %v307 = vpack.c.bf16 %v292, %v291
    %v308 = vpack.c.bf16 %v294, %v293
    %v309 = vpack.c.bf16 %v296, %v295
    %v310 = vpack.c.bf16 %v298, %v297
    %v311 = vpack.c.bf16 %v300, %v299
    %v312 = vpack.c.bf16 %v302, %v301
    %v313 = vpack.c.bf16 %v304, %v303
    %v314 = vpack.c.bf16 %v306, %v305
    %v315 = vld [vmem:[#allocation2] sm:$0xf]
    %v316 = vld [vmem:[#allocation2 + $0x4] sm:$0xf]
    %v317 = vld [vmem:[#allocation2 + $0x8] sm:$0xf]
    %v318 = vld [vmem:[#allocation2 + $0xc] sm:$0xf]
    %v319 = vld [vmem:[#allocation2 + $0x10] sm:$0xf]
    %v320 = vld [vmem:[#allocation2 + $0x14] sm:$0xf]
    %v321 = vld [vmem:[#allocation2 + $0x18] sm:$0xf]
    %v322 = vld [vmem:[#allocation2 + $0x1c] sm:$0xf]
    %v323 = vld [vmem:[#allocation2 + $0x20] sm:$0xf]
    %v324 = vld [vmem:[#allocation2 + $0x24] sm:$0xf]
    %v325 = vld [vmem:[#allocation2 + $0x28] sm:$0xf]
    %v326 = vld [vmem:[#allocation2 + $0x2c] sm:$0xf]
    %v327 = vld [vmem:[#allocation2 + $0x30] sm:$0xf]
    %v328 = vld [vmem:[#allocation2 + $0x34] sm:$0xf]
    %v329 = vld [vmem:[#allocation2 + $0x38] sm:$0xf]
    %v330 = vld [vmem:[#allocation2 + $0x3c] sm:$0xf]
    %v331 = vld [vmem:[%s5] sm:$0x1]
    %v333 = vlaneseq
    %v334 = vshrl.u32 %v333, 7
    %v335 = vsub.s32 0, %v334
    %v336 = vrot.slane %v331, %v335
    %v354 = vunpack.c.l.b16 %v315
    %v355 = vunpack.c.l.b16 %v316
    %v356 = vunpack.c.l.b16 %v317
    %v357 = vunpack.c.l.b16 %v318
    %v358 = vunpack.c.l.b16 %v319
    %v359 = vunpack.c.l.b16 %v320
    %v360 = vunpack.c.l.b16 %v321
    %v361 = vunpack.c.l.b16 %v322
    %v362 = vunpack.c.l.b16 %v323
    %v363 = vunpack.c.l.b16 %v324
    %v364 = vunpack.c.l.b16 %v325
    %v365 = vunpack.c.l.b16 %v326
    %v366 = vunpack.c.l.b16 %v327
    %v367 = vunpack.c.l.b16 %v328
    %v368 = vunpack.c.l.b16 %v329
    %v369 = vunpack.c.l.b16 %v330
    %v370 = vpack.c.b16 %v355, %v354
    %v371 = vpack.c.b16 %v357, %v356
    %v372 = vpack.c.b16 %v359, %v358
    %v373 = vpack.c.b16 %v361, %v360
    %v374 = vpack.c.b16 %v363, %v362
    %v375 = vpack.c.b16 %v365, %v364
    %v376 = vpack.c.b16 %v367, %v366
    %v377 = vpack.c.b16 %v369, %v368
    %386 = vmatprep.subr.bf16.mxu0 0
    %387 = vmatpush1.bf16.msra.mxu0 %v377
    %388 = vmatprep.subr.bf16.mxu0 0
    %389 = vmatpush1.bf16.msra.mxu0 %v376
    %390 = vmatprep.subr.bf16.mxu0 0
    %391 = vmatpush1.bf16.msra.mxu0 %v375
    %392 = vmatprep.subr.bf16.mxu0 0
    %393 = vmatpush1.bf16.msra.mxu0 %v374
    %394 = vmatprep.subr.bf16.mxu0 0
    %395 = vmatpush1.bf16.msra.mxu0 %v373
    %396 = vmatprep.subr.bf16.mxu0 0
    %397 = vmatpush1.bf16.msra.mxu0 %v372
    %398 = vmatprep.subr.bf16.mxu0 0
    %399 = vmatpush1.bf16.msra.mxu0 %v371
    %400 = vmatprep.subr.bf16.mxu0 0
    %401 = vmatpush1.bf16.msra.mxu0 %v370
    %402 = vmatprep.subr.bf16.mxu0 0
    %403 = vmatpush2.bf16.msra.mxu0 0
    %404 = vmatprep.subr.bf16.mxu0 0
    %405 = vmatpush2.bf16.msra.mxu0 0
    %406 = vmatprep.subr.bf16.mxu0 0
    %407 = vmatpush2.bf16.msra.mxu0 0
    %408 = vmatprep.subr.bf16.mxu0 0
    %409 = vmatpush2.bf16.msra.mxu0 0
    %410 = vmatprep.subr.bf16.mxu0 0
    %411 = vmatpush2.bf16.msra.mxu0 0
    %412 = vmatprep.subr.bf16.mxu0 0
    %413 = vmatpush2.bf16.msra.mxu0 0
    %414 = vmatprep.subr.bf16.mxu0 0
    %415 = vmatpush2.bf16.msra.mxu0 0
    %416 = vmatprep.subr.bf16.mxu0 0
    %417 = vmatpush2.bf16.msra.mxu0 0
    %418 = vmatprep.mubr.bf16.mxu0 0
    %419 = vmatmul.mubr.bf16.gmra.mxu0 %v307
    %v420 = vpop.f32.mrf.mxu0
    %v421 = vadd.f32 %v336, %v420
    %v422 = vpop.f32.mrf.mxu0
    %v423 = vpop.f32.mrf.mxu0
    %v424 = vadd.f32 %v336, %v423
    %v425 = vpop.f32.mrf.mxu0
    %426 = vmatprep.mubr.bf16.mxu0 0
    %427 = vmatmul.mubr.bf16.gmra.mxu0 %v308
    %v428 = vpop.f32.mrf.mxu0
    %v429 = vadd.f32 %v336, %v428
    %v430 = vpop.f32.mrf.mxu0
    %v431 = vpop.f32.mrf.mxu0
    %v432 = vadd.f32 %v336, %v431
    %v433 = vpop.f32.mrf.mxu0
    %434 = vmatprep.mubr.bf16.mxu0 0
    %435 = vmatmul.mubr.bf16.gmra.mxu0 %v309
    %v436 = vpop.f32.mrf.mxu0
    %v437 = vadd.f32 %v336, %v436
    %v438 = vpop.f32.mrf.mxu0
    %v439 = vpop.f32.mrf.mxu0
    %v440 = vadd.f32 %v336, %v439
    %v441 = vpop.f32.mrf.mxu0
    %442 = vmatprep.mubr.bf16.mxu0 0
    %443 = vmatmul.mubr.bf16.gmra.mxu0 %v310
    %v444 = vpop.f32.mrf.mxu0
    %v445 = vadd.f32 %v336, %v444
    %v446 = vpop.f32.mrf.mxu0
    %v447 = vpop.f32.mrf.mxu0
    %v448 = vadd.f32 %v336, %v447
    %v449 = vpop.f32.mrf.mxu0
    %450 = vmatprep.mubr.bf16.mxu0 0
    %451 = vmatmul.mubr.bf16.gmra.mxu0 %v311
    %v452 = vpop.f32.mrf.mxu0
    %v453 = vadd.f32 %v336, %v452
    %v454 = vpop.f32.mrf.mxu0
    %v455 = vpop.f32.mrf.mxu0
    %v456 = vadd.f32 %v336, %v455
    %v457 = vpop.f32.mrf.mxu0
    %458 = vmatprep.mubr.bf16.mxu0 0
    %459 = vmatmul.mubr.bf16.gmra.mxu0 %v312
    %v460 = vpop.f32.mrf.mxu0
    %v461 = vadd.f32 %v336, %v460
    %v462 = vpop.f32.mrf.mxu0
    %v463 = vpop.f32.mrf.mxu0
    %v464 = vadd.f32 %v336, %v463
    %v465 = vpop.f32.mrf.mxu0
    %466 = vmatprep.mubr.bf16.mxu0 0
    %467 = vmatmul.mubr.bf16.gmra.mxu0 %v313
    %v468 = vpop.f32.mrf.mxu0
    %v469 = vadd.f32 %v336, %v468
    %v470 = vpop.f32.mrf.mxu0
    %v471 = vpop.f32.mrf.mxu0
    %v472 = vadd.f32 %v336, %v471
    %v473 = vpop.f32.mrf.mxu0
    %474 = vmatprep.mubr.bf16.mxu0 0
    %475 = vmatmul.mubr.bf16.gmra.mxu0 %v314
    %v476 = vpop.f32.mrf.mxu0
    %v477 = vadd.f32 %v336, %v476
    %v478 = vpop.f32.mrf.mxu0
    %v479 = vpop.f32.mrf.mxu0
    %v480 = vadd.f32 %v336, %v479
    %v481 = vpop.f32.mrf.mxu0
    %482 = vdwg.mxu0
    %v483 = vmax.f32 %v421, 0.0
    %v484 = vmax.f32 %v424, 0.0
    %v485 = vmax.f32 %v429, 0.0
    %v486 = vmax.f32 %v432, 0.0
    %v487 = vmax.f32 %v437, 0.0
    %v488 = vmax.f32 %v440, 0.0
    %v489 = vmax.f32 %v445, 0.0
    %v490 = vmax.f32 %v448, 0.0
    %v491 = vmax.f32 %v453, 0.0
    %v492 = vmax.f32 %v456, 0.0
    %v493 = vmax.f32 %v461, 0.0
    %v494 = vmax.f32 %v464, 0.0
    %v495 = vmax.f32 %v469, 0.0
    %v496 = vmax.f32 %v472, 0.0
    %v497 = vmax.f32 %v477, 0.0
    %v498 = vmax.f32 %v480, 0.0
    %v499 = vpack.c.bf16 %v484, %v483
    %v500 = vpack.c.bf16 %v486, %v485
    %v501 = vpack.c.bf16 %v488, %v487
    %v502 = vpack.c.bf16 %v490, %v489
    %v503 = vpack.c.bf16 %v492, %v491
    %v504 = vpack.c.bf16 %v494, %v493
    %v505 = vpack.c.bf16 %v496, %v495
    %v506 = vpack.c.bf16 %v498, %v497
    %v507 = vld [vmem:[#allocation5] sm:$0xf]
    %v508 = vld [vmem:[#allocation5 + $0x4] sm:$0xf]
    %v509 = vld [vmem:[#allocation5 + $0x8] sm:$0xf]
    %v510 = vld [vmem:[#allocation5 + $0xc] sm:$0xf]
    %v511 = vld [vmem:[#allocation5 + $0x10] sm:$0xf]
    %v512 = vld [vmem:[#allocation5 + $0x14] sm:$0xf]
    %v513 = vld [vmem:[#allocation5 + $0x18] sm:$0xf]
    %v514 = vld [vmem:[#allocation5 + $0x1c] sm:$0xf]
    %v515 = vld [vmem:[#allocation5 + $0x20] sm:$0xf]
    %v516 = vld [vmem:[#allocation5 + $0x24] sm:$0xf]
    %v517 = vld [vmem:[#allocation5 + $0x28] sm:$0xf]
    %v518 = vld [vmem:[#allocation5 + $0x2c] sm:$0xf]
    %v519 = vld [vmem:[#allocation5 + $0x30] sm:$0xf]
    %v520 = vld [vmem:[#allocation5 + $0x34] sm:$0xf]
    %v521 = vld [vmem:[#allocation5 + $0x38] sm:$0xf]
    %v522 = vld [vmem:[#allocation5 + $0x3c] sm:$0xf]
    %v523 = vld [vmem:[%s7] sm:$0x1]
    %v525 = vlaneseq
    %v526 = vshrl.u32 %v525, 7
    %v527 = vsub.s32 0, %v526
    %v528 = vrot.slane %v523, %v527
    %v546 = vunpack.c.l.b16 %v507
    %v547 = vunpack.c.l.b16 %v508
    %v548 = vunpack.c.l.b16 %v509
    %v549 = vunpack.c.l.b16 %v510
    %v550 = vunpack.c.l.b16 %v511
    %v551 = vunpack.c.l.b16 %v512
    %v552 = vunpack.c.l.b16 %v513
    %v553 = vunpack.c.l.b16 %v514
    %v554 = vunpack.c.l.b16 %v515
    %v555 = vunpack.c.l.b16 %v516
    %v556 = vunpack.c.l.b16 %v517
    %v557 = vunpack.c.l.b16 %v518
    %v558 = vunpack.c.l.b16 %v519
    %v559 = vunpack.c.l.b16 %v520
    %v560 = vunpack.c.l.b16 %v521
    %v561 = vunpack.c.l.b16 %v522
    %v562 = vpack.c.b16 %v547, %v546
    %v563 = vpack.c.b16 %v549, %v548
    %v564 = vpack.c.b16 %v551, %v550
    %v565 = vpack.c.b16 %v553, %v552
    %v566 = vpack.c.b16 %v555, %v554
    %v567 = vpack.c.b16 %v557, %v556
    %v568 = vpack.c.b16 %v559, %v558
    %v569 = vpack.c.b16 %v561, %v560
    %578 = vmatprep.subr.bf16.mxu0 0
    %579 = vmatpush1.bf16.msra.mxu0 %v569
    %580 = vmatprep.subr.bf16.mxu0 0
    %581 = vmatpush1.bf16.msra.mxu0 %v568
    %582 = vmatprep.subr.bf16.mxu0 0
    %583 = vmatpush1.bf16.msra.mxu0 %v567
    %584 = vmatprep.subr.bf16.mxu0 0
    %585 = vmatpush1.bf16.msra.mxu0 %v566
    %586 = vmatprep.subr.bf16.mxu0 0
    %587 = vmatpush1.bf16.msra.mxu0 %v565
    %588 = vmatprep.subr.bf16.mxu0 0
    %589 = vmatpush1.bf16.msra.mxu0 %v564
    %590 = vmatprep.subr.bf16.mxu0 0
    %591 = vmatpush1.bf16.msra.mxu0 %v563
    %592 = vmatprep.subr.bf16.mxu0 0
    %593 = vmatpush1.bf16.msra.mxu0 %v562
    %594 = vmatprep.subr.bf16.mxu0 0
    %595 = vmatpush2.bf16.msra.mxu0 0
    %596 = vmatprep.subr.bf16.mxu0 0
    %597 = vmatpush2.bf16.msra.mxu0 0
    %598 = vmatprep.subr.bf16.mxu0 0
    %599 = vmatpush2.bf16.msra.mxu0 0
    %600 = vmatprep.subr.bf16.mxu0 0
    %601 = vmatpush2.bf16.msra.mxu0 0
    %602 = vmatprep.subr.bf16.mxu0 0
    %603 = vmatpush2.bf16.msra.mxu0 0
    %604 = vmatprep.subr.bf16.mxu0 0
    %605 = vmatpush2.bf16.msra.mxu0 0
    %606 = vmatprep.subr.bf16.mxu0 0
    %607 = vmatpush2.bf16.msra.mxu0 0
    %608 = vmatprep.subr.bf16.mxu0 0
    %609 = vmatpush2.bf16.msra.mxu0 0
    %610 = vmatprep.mubr.bf16.mxu0 0
    %611 = vmatmul.mubr.bf16.gmra.mxu0 %v499
    %v612 = vpop.f32.mrf.mxu0
    %v613 = vadd.f32 %v528, %v612
    %v614 = vpop.f32.mrf.mxu0
    %v615 = vpop.f32.mrf.mxu0
    %v616 = vadd.f32 %v528, %v615
    %v617 = vpop.f32.mrf.mxu0
    %618 = vmatprep.mubr.bf16.mxu0 0
    %619 = vmatmul.mubr.bf16.gmra.mxu0 %v500
    %v620 = vpop.f32.mrf.mxu0
    %v621 = vadd.f32 %v528, %v620
    %v622 = vpop.f32.mrf.mxu0
    %v623 = vpop.f32.mrf.mxu0
    %v624 = vadd.f32 %v528, %v623
    %v625 = vpop.f32.mrf.mxu0
    %626 = vmatprep.mubr.bf16.mxu0 0
    %627 = vmatmul.mubr.bf16.gmra.mxu0 %v501
    %v628 = vpop.f32.mrf.mxu0
    %v629 = vadd.f32 %v528, %v628
    %v630 = vpop.f32.mrf.mxu0
    %v631 = vpop.f32.mrf.mxu0
    %v632 = vadd.f32 %v528, %v631
    %v633 = vpop.f32.mrf.mxu0
    %634 = vmatprep.mubr.bf16.mxu0 0
    %635 = vmatmul.mubr.bf16.gmra.mxu0 %v502
    %v636 = vpop.f32.mrf.mxu0
    %v637 = vadd.f32 %v528, %v636
    %v638 = vpop.f32.mrf.mxu0
    %v639 = vpop.f32.mrf.mxu0
    %v640 = vadd.f32 %v528, %v639
    %v641 = vpop.f32.mrf.mxu0
    %642 = vmatprep.mubr.bf16.mxu0 0
    %643 = vmatmul.mubr.bf16.gmra.mxu0 %v503
    %v644 = vpop.f32.mrf.mxu0
    %v645 = vadd.f32 %v528, %v644
    %v646 = vpop.f32.mrf.mxu0
    %v647 = vpop.f32.mrf.mxu0
    %v648 = vadd.f32 %v528, %v647
    %v649 = vpop.f32.mrf.mxu0
    %650 = vmatprep.mubr.bf16.mxu0 0
    %651 = vmatmul.mubr.bf16.gmra.mxu0 %v504
    %v652 = vpop.f32.mrf.mxu0
    %v653 = vadd.f32 %v528, %v652
    %v654 = vpop.f32.mrf.mxu0
    %v655 = vpop.f32.mrf.mxu0
    %v656 = vadd.f32 %v528, %v655
    %v657 = vpop.f32.mrf.mxu0
    %658 = vmatprep.mubr.bf16.mxu0 0
    %659 = vmatmul.mubr.bf16.gmra.mxu0 %v505
    %v660 = vpop.f32.mrf.mxu0
    %v661 = vadd.f32 %v528, %v660
    %v662 = vpop.f32.mrf.mxu0
    %v663 = vpop.f32.mrf.mxu0
    %v664 = vadd.f32 %v528, %v663
    %v665 = vpop.f32.mrf.mxu0
    %666 = vmatprep.mubr.bf16.mxu0 0
    %667 = vmatmul.mubr.bf16.gmra.mxu0 %v506
    %v668 = vpop.f32.mrf.mxu0
    %v669 = vadd.f32 %v528, %v668
    %v670 = vpop.f32.mrf.mxu0
    %v671 = vpop.f32.mrf.mxu0
    %v672 = vadd.f32 %v528, %v671
    %v673 = vpop.f32.mrf.mxu0
    %674 = vdwg.mxu0
    %v675 = vld [vmem:[%s0] sm:$0xff]
    %v676 = vld [vmem:[%s0 + $0x8] sm:$0xff]
    %v677 = vld [vmem:[%s0 + $0x10] sm:$0xff]
    %v678 = vld [vmem:[%s0 + $0x18] sm:$0xff]
    %v679 = vld [vmem:[%s0 + $0x20] sm:$0xff]
    %v680 = vld [vmem:[%s0 + $0x28] sm:$0xff]
    %v681 = vld [vmem:[%s0 + $0x30] sm:$0xff]
    %v682 = vld [vmem:[%s0 + $0x38] sm:$0xff]
    %v683 = vld [vmem:[%s0 + $0x40] sm:$0xff]
    %v684 = vld [vmem:[%s0 + $0x48] sm:$0xff]
    %v685 = vld [vmem:[%s0 + $0x50] sm:$0xff]
    %v686 = vld [vmem:[%s0 + $0x58] sm:$0xff]
    %v687 = vld [vmem:[%s0 + $0x60] sm:$0xff]
    %v688 = vld [vmem:[%s0 + $0x68] sm:$0xff]
    %v689 = vld [vmem:[%s0 + $0x70] sm:$0xff]
    %v690 = vld [vmem:[%s0 + $0x78] sm:$0xff]
    %692 = vset.pattern.permute.xlu0 0
    %693 = vperm.xlu0 %692, %v675
    %v694 = vpop.permute.xlu0 %693
    %697 = vset.pattern.permute.xlu0 0
    %698 = vperm.xlu0 %697, %v676
    %v699 = vpop.permute.xlu0 %698
    %702 = vset.pattern.permute.xlu0 0
    %703 = vperm.xlu0 %702, %v677
    %v704 = vpop.permute.xlu0 %703
    %707 = vset.pattern.permute.xlu0 0
    %708 = vperm.xlu0 %707, %v678
    %v709 = vpop.permute.xlu0 %708
    %712 = vset.pattern.permute.xlu0 0
    %713 = vperm.xlu0 %712, %v679
    %v714 = vpop.permute.xlu0 %713
    %717 = vset.pattern.permute.xlu0 0
    %718 = vperm.xlu0 %717, %v680
    %v719 = vpop.permute.xlu0 %718
    %722 = vset.pattern.permute.xlu0 0
    %723 = vperm.xlu0 %722, %v681
    %v724 = vpop.permute.xlu0 %723
    %727 = vset.pattern.permute.xlu0 0
    %728 = vperm.xlu0 %727, %v682
    %v729 = vpop.permute.xlu0 %728
    %732 = vset.pattern.permute.xlu0 0
    %733 = vperm.xlu0 %732, %v683
    %v734 = vpop.permute.xlu0 %733
    %737 = vset.pattern.permute.xlu0 0
    %738 = vperm.xlu0 %737, %v684
    %v739 = vpop.permute.xlu0 %738
    %742 = vset.pattern.permute.xlu0 0
    %743 = vperm.xlu0 %742, %v685
    %v744 = vpop.permute.xlu0 %743
    %747 = vset.pattern.permute.xlu0 0
    %748 = vperm.xlu0 %747, %v686
    %v749 = vpop.permute.xlu0 %748
    %752 = vset.pattern.permute.xlu0 0
    %753 = vperm.xlu0 %752, %v687
    %v754 = vpop.permute.xlu0 %753
    %757 = vset.pattern.permute.xlu0 0
    %758 = vperm.xlu0 %757, %v688
    %v759 = vpop.permute.xlu0 %758
    %762 = vset.pattern.permute.xlu0 0
    %763 = vperm.xlu0 %762, %v689
    %v764 = vpop.permute.xlu0 %763
    %767 = vset.pattern.permute.xlu0 0
    %768 = vperm.xlu0 %767, %v690
    %v769 = vpop.permute.xlu0 %768
    %v771 = vmul.f32 %v613, %v694
    %v772 = vmul.f32 %v616, %v699
    %v773 = vmul.f32 %v621, %v704
    %v774 = vmul.f32 %v624, %v709
    %v775 = vmul.f32 %v629, %v714
    %v776 = vmul.f32 %v632, %v719
    %v777 = vmul.f32 %v637, %v724
    %v778 = vmul.f32 %v640, %v729
    %v779 = vmul.f32 %v645, %v734
    %v780 = vmul.f32 %v648, %v739
    %v781 = vmul.f32 %v653, %v744
    %v782 = vmul.f32 %v656, %v749
    %v783 = vmul.f32 %v661, %v754
    %v784 = vmul.f32 %v664, %v759
    %v785 = vmul.f32 %v669, %v764
    %v786 = vmul.f32 %v672, %v769
    %787 = vst [vmem:[#allocation7] sm:$0xff] %v771
    %788 = vst [vmem:[#allocation7 + $0x8] sm:$0xff] %v772
    %789 = vst [vmem:[#allocation7 + $0x10] sm:$0xff] %v773
    %790 = vst [vmem:[#allocation7 + $0x18] sm:$0xff] %v774
    %791 = vst [vmem:[#allocation7 + $0x20] sm:$0xff] %v775
    %792 = vst [vmem:[#allocation7 + $0x28] sm:$0xff] %v776
    %793 = vst [vmem:[#allocation7 + $0x30] sm:$0xff] %v777
    %794 = vst [vmem:[#allocation7 + $0x38] sm:$0xff] %v778
    %795 = vst [vmem:[#allocation7 + $0x40] sm:$0xff] %v779
    %796 = vst [vmem:[#allocation7 + $0x48] sm:$0xff] %v780
    %797 = vst [vmem:[#allocation7 + $0x50] sm:$0xff] %v781
    %798 = vst [vmem:[#allocation7 + $0x58] sm:$0xff] %v782
    %799 = vst [vmem:[#allocation7 + $0x60] sm:$0xff] %v783
    %800 = vst [vmem:[#allocation7 + $0x68] sm:$0xff] %v784
    %801 = vst [vmem:[#allocation7 + $0x70] sm:$0xff] %v785
    %802 = vst [vmem:[#allocation7 + $0x78] sm:$0xff] %v786
    // Predicated region
    $region42: #{tpu_custom_call.1} parent=1 // pred_check
      _
    $region43: #{tpu_custom_call.1} parent=1 // pred_check_branch
      %804 = sbr.rel (0) target = $region45
    $region44: #{tpu_custom_call.1} parent=1 // pred_region
      %s806 = ssub.s32 2048, 2048
      %807 = vsyncadd [#allocation4], %s806
      %s808 = sshll.u32 [#allocation7], 4
      %s809 = int_to_ptr.vmem [resolvable:$true] %s808
      %814 = dma.vmem_to_hbm [thread:$0]  %s809, 2048, %s8, [#allocation4], 128, 128, 8
    $region45: #{tpu_custom_call.1} parent=1 // pred_fallthru
      _
    // Predicated region
    $region46: #{tpu_custom_call.1} parent=1 // pred_check
      _
    $region47: #{tpu_custom_call.1} parent=1 // pred_check_branch
      %816 = sbr.rel (0) target = $region49
    $region48: #{tpu_custom_call.1} parent=1 // pred_region
      %817 = dma.done [#allocation4], 2048
    $region49: #{tpu_custom_call.1} parent=1 // pred_fallthru
      _
    %818 = vsyncpa [#allocation3], 1
    %819 = vsyncpa [#allocation6], 1
    %820 = vsyncpa [#allocation4], 1

</llo_original>
